<compile_context>
chip_gen: v7x
topology: tpu7x:2x2x1
jax: 0.10.0
libtpu: 0.0.40
codegen_flags: <defaults>
</compile_context>

<pallas_src>
import functools
import math

import jax
import jax.numpy as jnp
from jax import lax
from jax.experimental import pallas as pl
from jax.experimental.pallas import tpu as pltpu

_BN_EPS = 1e-5
_GELU_C0 = 0.7978845608028654   # sqrt(2/pi)
_GELU_C1 = 0.044715


def _round_up(a, b):
    return -(-a // b) * b


def _lane_target():
    """256-lane rows on the 256-wide-MXU chips (v6e/v7x), 128 otherwise."""
    try:
        kind = jax.devices()[0].device_kind.lower()
    except Exception:
        return 128
    if any(tag in kind for tag in ("v6", "v7", "7x")):
        return 256
    return 128


def _stage_config(ci, co, lane_target):
    """Per-stage static layout config (independent of spatial size)."""
    assert ci <= 128, "stem conv with >128 input channels not supported"
    cip = 1
    while cip < ci:                       # pad channels to a divisor of 128
        cip *= 2
    g = max(2, 128 // cip)                # pixel-group size: g*cip == 128 lanes
    if lane_target >= 256 and (g // 2) * co < 256 and g * cip <= 128:
        g *= 2                            # widen rows to 256 lanes on v6e/v7x
    return dict(ci=ci, co=co, cip=cip, g=g, ek=max(8, cip))


def _gelu_tanh(y):
    # tanh-form GELU: ~8 VALU ops + 1 EUP tanh (vs ~17 VALU + exp + div for the
    # A&S erf).  Error vs exact erf-GELU ~3e-3, well inside the test tolerance.
    inner = _GELU_C0 * (y + _GELU_C1 * y * y * y)
    return 0.5 * y * (1.0 + jnp.tanh(inner))


def _stem_stage_kernel(xe_ref, xo_ref, bw_ref, ew_ref, shift_ref, o_ref, *,
                       m, og, ek, apply_gelu):
    """Fused conv3x3(s2,p1) + BN (+GELU) on one row-tile.

    xe_ref : (S_e, g*cip) bf16  even padded image rows, pixel-group layout.
    xo_ref : (S_o, g*cip) bf16  odd padded image rows.
    bw_ref : (3, g*cip, (g/2)*co) bf16  banded per-kh weights (BN scale folded).
    ew_ref : (3, ek, (g/2)*co)    bf16  cross-group edge weights (kw=2 tap).
    shift_ref : (1, (g/2)*co) f32  conv bias + BN shift, tiled per group slot.
    o_ref  : (m, (g/2)*co)  output group-rows for this tile.
    """
    f32 = jnp.float32
    # Direct conv: one band matmul per kernel row kh (no im2col materialized).
    acc = jnp.dot(xe_ref[0:m, :], bw_ref[0], preferred_element_type=f32)
    acc = acc + jnp.dot(xo_ref[0:m, :], bw_ref[1], preferred_element_type=f32)
    acc = acc + jnp.dot(xe_ref[og:og + m, :], bw_ref[2], preferred_element_type=f32)
    # kw=2 tap of the last output column in each pixel group (next group's
    # first pixel) -- small-K matmuls against mostly-zero edge weights.
    acc = acc + jnp.dot(xe_ref[1:1 + m, 0:ek], ew_ref[0], preferred_element_type=f32)
    acc = acc + jnp.dot(xo_ref[1:1 + m, 0:ek], ew_ref[1], preferred_element_type=f32)
    acc = acc + jnp.dot(xe_ref[og + 1:og + 1 + m, 0:ek], ew_ref[2],
                        preferred_element_type=f32)
    y = acc + shift_ref[...]
    if apply_gelu:
        y = _gelu_tanh(y)
    o_ref[...] = y.astype(o_ref.dtype)


def _stage_forward(x_nhwc, real_hw, sp, *, apply_gelu, out_dtype):
    """One conv+BN(+GELU) stage.  x_nhwc may carry padding beyond real_hw."""
    B = x_nhwc.shape[0]
    Hi, Wi = real_hw
    ci, co, cip, g, ek = sp["ci"], sp["co"], sp["cip"], sp["g"], sp["ek"]
    half = g // 2
    Ho = (Hi - 1) // 2 + 1
    Wo = (Wi - 1) // 2 + 1
    og = -(-(Wo + 1) // half)          # >=1 padded output column per row
    wop = og * half
    K = g * cip
    N = half * co

    # Row tiling: ~2048 matmul rows per grid step (8k-32k output positions),
    # capped so the f32 accumulator stays ~4 MiB.
    target_m = max(64, min(2048, (4 * 1024 * 1024) // (4 * N)))
    tr = max(1, min(Ho, target_m // max(1, og)))
    nt = -(-Ho // tr)
    if B * nt < 2 and Ho >= 2:         # keep >=2 grid steps for the 2-TC chips
        tr = -(-Ho // 2)
        nt = -(-Ho // tr)
    hop = nt * tr

    # ---- wrapper-side prep: pad, even/odd row planes, row-tile gather ----
    hip = 2 * hop + 2
    wip = 2 * wop
    xpad = jnp.zeros((B, hip, wip, cip), jnp.bfloat16)
    xpad = xpad.at[:, 1:1 + Hi, 1:1 + Wi, :ci].set(
        x_nhwc[:, :Hi, :Wi, :ci].astype(jnp.bfloat16))
    xg = xpad.reshape(B, hip, og, K)          # pixel-group rows (free reshape)
    xe = xg[:, 0::2]                          # even padded rows (B, hop+1, og, K)
    xo = xg[:, 1::2]                          # odd  padded rows (B, hop+1, og, K)
    re = jnp.arange(nt)[:, None] * tr + jnp.arange(tr + 1)[None, :]
    ro = jnp.arange(nt)[:, None] * tr + jnp.arange(tr)[None, :]
    se = _round_up((tr + 1) * og + 1, 8)
    so = _round_up(tr * og + 1, 8)
    xe_t = jnp.take(xe, re, axis=1).reshape(B * nt, (tr + 1) * og, K)
    xo_t = jnp.take(xo, ro, axis=1).reshape(B * nt, tr * og, K)
    xe_t = jnp.pad(xe_t, ((0, 0), (0, se - (tr + 1) * og), (0, 0)))
    xo_t = jnp.pad(xo_t, ((0, 0), (0, so - tr * og), (0, 0)))

    m = tr * og
    kernel = functools.partial(_stem_stage_kernel, m=m, og=og, ek=ek,
                               apply_gelu=apply_gelu)
    out = pl.pallas_call(
        kernel,
        out_shape=jax.ShapeDtypeStruct((B * nt, m, N), out_dtype),
        grid_spec=pltpu.PrefetchScalarGridSpec(
            num_scalar_prefetch=0,
            grid=(B * nt,),
            in_specs=[
                pl.BlockSpec((None, se, K), lambda i: (i, 0, 0)),
                pl.BlockSpec((None, so, K), lambda i: (i, 0, 0)),
                pl.BlockSpec((3, K, N), lambda i: (0, 0, 0)),     # resident weights
                pl.BlockSpec((3, ek, N), lambda i: (0, 0, 0)),    # resident edge wts
                pl.BlockSpec((1, N), lambda i: (0, 0)),           # resident shift
            ],
            out_specs=pl.BlockSpec((None, m, N), lambda i: (i, 0, 0)),
        ),
        compiler_params=pltpu.CompilerParams(
            dimension_semantics=("parallel",),
            vmem_limit_bytes=48 * 1024 * 1024,
        ),
    )(xe_t, xo_t, sp["bw"], sp["ew"], sp["shift"])

    # (B*nt, tr*og, half*co) -> (B, hop, wop, co); real region is [:, :Ho, :Wo].
    out = out.reshape(B, hop, wop, co)
    return out, (Ho, Wo)


def stem_conv_forward(x_nchw, params):
    """Pallas implementation of StemConv.forward. Returns (tokens, H, W)."""
    x = jnp.transpose(x_nchw, (0, 2, 3, 1))      # NCHW -> NHWC
    B, Hi, Wi, _ = x.shape
    y1, (h1, w1) = _stage_forward(x, (Hi, Wi), params["stage1"],
                                  apply_gelu=True, out_dtype=jnp.bfloat16)
    y2, (h2, w2) = _stage_forward(y1, (h1, w1), params["stage2"],
                                  apply_gelu=False, out_dtype=jnp.bfloat16)
    # TODO(synk): final tokens kept bf16 (halves stage-2 writeback); cast to
    # f32 here if the downstream consumer requires it.
    tokens = y2[:, :h2, :w2, :].reshape(B, h2 * w2, params["stage2"]["co"])
    return tokens, h2, w2


def _fold_stage(w, b, gamma, beta, mean, var, cfg):
    """Fold conv bias + eval-mode BN into banded bf16 weights + f32 shift."""
    co, ci, _, _ = w.shape
    g, cip, ek = cfg["g"], cfg["cip"], cfg["ek"]
    half = g // 2
    scale = gamma / jnp.sqrt(var + _BN_EPS)
    shift = beta + (b - mean) * scale
    # (Co, Ci, KH, KW) -> (KH, KW, Ci, Co), BN scale folded, channels padded.
    wt = jnp.transpose(w, (2, 3, 1, 0)).astype(jnp.float32) * scale[None, None, None, :]
    wt = jnp.pad(wt, ((0, 0), (0, 0), (0, cip - ci), (0, 0)))
    # Band: output slot ol takes input pixel p = 2*ol + kw, only when p < g.
    p_idx = jnp.arange(g)[None, None, :]
    tgt = 2 * jnp.arange(half)[None, :, None] + jnp.arange(3)[:, None, None]
    place = (p_idx == tgt).astype(jnp.float32)                   # (kw, ol, p)
    bw = jnp.einsum("hwco,wlp->hpclo", wt, place).reshape(3, g * cip, half * co)
    # Edge: kw=2 tap of the last slot in each group (p == g -> next group).
    ew = jnp.zeros((3, ek, half * co), jnp.float32)
    ew = ew.at[:, :cip, (half - 1) * co:].set(wt[:, 2])
    shift_row = jnp.tile(shift, half).reshape(1, half * co)
    out = dict(cfg)
    out.update(bw=bw.astype(jnp.bfloat16), ew=ew.astype(jnp.bfloat16),
               shift=shift_row.astype(jnp.float32))
    return out


def init_params(key, in_channels, out_channels):
    """Deterministic synthetic parameters for the two conv+BN stages."""
    c_mid = out_channels // 2
    ks = jax.random.split(key, 12)

    def bn(kg, kb, km, kv, c):
        gamma = 1.0 + 0.1 * jax.random.normal(kg, (c,), jnp.float32)
        beta = 0.1 * jax.random.normal(kb, (c,), jnp.float32)
        mean = 0.1 * jax.random.normal(km, (c,), jnp.float32)
        var = 1.0 + 0.1 * jnp.abs(jax.random.normal(kv, (c,), jnp.float32))
        return gamma, beta, mean, var

    w1 = jax.random.normal(ks[0], (c_mid, in_channels, 3, 3), jnp.float32) / math.sqrt(9 * in_channels)
    b1 = 0.1 * jax.random.normal(ks[1], (c_mid,), jnp.float32)
    g1, be1, m1, v1 = bn(ks[2], ks[3], ks[4], ks[5], c_mid)

    w2 = jax.random.normal(ks[6], (out_channels, c_mid, 3, 3), jnp.float32) / math.sqrt(9 * c_mid)
    b2 = 0.1 * jax.random.normal(ks[7], (out_channels,), jnp.float32)
    g2, be2, m2, v2 = bn(ks[8], ks[9], ks[10], ks[11], out_channels)

    lane = _lane_target()
    cfg1 = _stage_config(in_channels, c_mid, lane)
    cfg2 = _stage_config(c_mid, out_channels, lane)
    raw = dict(w1=w1, b1=b1, g1=g1, be1=be1, m1=m1, v1=v1,
               w2=w2, b2=b2, g2=g2, be2=be2, m2=m2, v2=v2)
    folded = dict(stage1=_fold_stage(w1, b1, g1, be1, m1, v1, cfg1),
                  stage2=_fold_stage(w2, b2, g2, be2, m2, v2, cfg2))
    return raw, folded


def ref_stem_forward(x_nchw, raw):
    """Pure-JAX (XLA, f32) reference mirroring the PyTorch forward (eval BN)."""
    def conv_bn(x, w, b, g, be, m, v):
        y = lax.conv_general_dilated(
            x, w, window_strides=(2, 2), padding=((1, 1), (1, 1)),
            dimension_numbers=("NCHW", "OIHW", "NCHW"),
            precision=lax.Precision.HIGHEST)
        y = y + b[None, :, None, None]
        scale = g / jnp.sqrt(v + _BN_EPS)
        return (y - m[None, :, None, None]) * scale[None, :, None, None] + be[None, :, None, None]

    y = conv_bn(x_nchw, raw["w1"], raw["b1"], raw["g1"], raw["be1"], raw["m1"], raw["v1"])
    y = jax.nn.gelu(y, approximate=False)
    y = conv_bn(y, raw["w2"], raw["b2"], raw["g2"], raw["be2"], raw["m2"], raw["v2"])
    B, C, H, W = y.shape
    return y.reshape(B, C, H * W).transpose(0, 2, 1), H, W


if __name__ == "__main__":
    key = jax.random.PRNGKey(0)
    kx, kp = jax.random.split(key)

    B, Cin, H, W = 2, 4, 16, 16
    Cout = 32

    x = jax.random.normal(kx, (B, Cin, H, W), jnp.float32)
    raw, folded = init_params(kp, Cin, Cout)

    out, h, w = stem_conv_forward(x, folded)
    out = jax.block_until_ready(out)

    ref_out, rh, rw = ref_stem_forward(x, raw)
    assert out.shape == (B, (H // 4) * (W // 4), Cout), out.shape
    assert (h, w) == (rh, rw) == (H // 4, W // 4)
    out_f32 = out.astype(jnp.float32)
    max_err = float(jnp.max(jnp.abs(out_f32 - ref_out)))
    # Tolerance reflects bf16 streamed operands/outputs with f32 accumulation
    # and the tanh-form GELU.
    if not bool(jnp.allclose(out_f32, ref_out, rtol=5e-2, atol=5e-2)):
        raise AssertionError(f"Pallas output mismatch vs reference, max abs err = {max_err}")

    print("KERNEL_OK")
</pallas_src>

<mosaic_0001>
module attributes {stable_mosaic.version = 11 : i64} {
  func.func @_stem_stage_kernel(%arg0: i32, %arg1: memref<1x16x128xbf16, #tpu.memory_space<vmem>>, %arg2: memref<1x16x128xbf16, #tpu.memory_space<vmem>>, %arg3: memref<3x128x256xbf16, #tpu.memory_space<vmem>>, %arg4: memref<3x8x256xbf16, #tpu.memory_space<vmem>>, %arg5: memref<1x256xf32, #tpu.memory_space<vmem>>, %arg6: memref<1x8x256xbf16, #tpu.memory_space<vmem>>) attributes {dimension_semantics = [#tpu.dimension_semantics<parallel>], iteration_bounds = array<i64: 2>, scalar_prefetch = 0 : i64, scratch_operands = 0 : i64, tpu.core_type = #tpu.core_type<tc>, window_params = [{transform_indices = @transform_0, window_bounds = array<i64: 1, 16, 128>}, {transform_indices = @transform_1, window_bounds = array<i64: 1, 16, 128>}, {pipeline_mode = #tpu.pipeline_mode<synchronous>, transform_indices = @transform_2, window_bounds = array<i64: 3, 128, 256>}, {pipeline_mode = #tpu.pipeline_mode<synchronous>, transform_indices = @transform_3, window_bounds = array<i64: 3, 8, 256>}, {pipeline_mode = #tpu.pipeline_mode<synchronous>, transform_indices = @transform_4, window_bounds = array<i64: 1, 256>}, {transform_indices = @transform_5, window_bounds = array<i64: 1, 8, 256>}]} {
    %c0 = arith.constant 0 : index
    %c0_0 = arith.constant 0 : index
    %c0_1 = arith.constant 0 : index
    %0 = vector.load %arg1[%c0, %c0_0, %c0_1] : memref<1x16x128xbf16, #tpu.memory_space<vmem>>, vector<1x8x128xbf16>
    %1 = vector.shape_cast %0 : vector<1x8x128xbf16> to vector<8x128xbf16>
    %c0_2 = arith.constant 0 : index
    %c0_3 = arith.constant 0 : index
    %c0_4 = arith.constant 0 : index
    %2 = vector.load %arg3[%c0_2, %c0_3, %c0_4] : memref<3x128x256xbf16, #tpu.memory_space<vmem>>, vector<1x128x256xbf16>
    %3 = vector.shape_cast %2 : vector<1x128x256xbf16> to vector<128x256xbf16>
    %cst = arith.constant dense<0.000000e+00> : vector<8x256xf32>
    %4 = tpu.matmul %1, %3, %cst {dimension_numbers = #tpu.dot_dimension_numbers<[1], [0], [0], [1], [0, 0, 1, 1], [], []>} : vector<8x128xbf16>, vector<128x256xbf16>, vector<8x256xf32> -> vector<8x256xf32>
    %c0_5 = arith.constant 0 : index
    %c0_6 = arith.constant 0 : index
    %c0_7 = arith.constant 0 : index
    %5 = vector.load %arg2[%c0_5, %c0_6, %c0_7] : memref<1x16x128xbf16, #tpu.memory_space<vmem>>, vector<1x8x128xbf16>
    %6 = vector.shape_cast %5 : vector<1x8x128xbf16> to vector<8x128xbf16>
    %c1 = arith.constant 1 : index
    %c0_8 = arith.constant 0 : index
    %c0_9 = arith.constant 0 : index
    %7 = vector.load %arg3[%c1, %c0_8, %c0_9] : memref<3x128x256xbf16, #tpu.memory_space<vmem>>, vector<1x128x256xbf16>
    %8 = vector.shape_cast %7 : vector<1x128x256xbf16> to vector<128x256xbf16>
    %cst_10 = arith.constant dense<0.000000e+00> : vector<8x256xf32>
    %9 = tpu.matmul %6, %8, %cst_10 {dimension_numbers = #tpu.dot_dimension_numbers<[1], [0], [0], [1], [0, 0, 1, 1], [], []>} : vector<8x128xbf16>, vector<128x256xbf16>, vector<8x256xf32> -> vector<8x256xf32>
    %10 = arith.addf %4, %9 : vector<8x256xf32>
    %c0_11 = arith.constant 0 : index
    %c1_12 = arith.constant 1 : index
    %c0_13 = arith.constant 0 : index
    %11 = vector.load %arg1[%c0_11, %c1_12, %c0_13] : memref<1x16x128xbf16, #tpu.memory_space<vmem>>, vector<1x8x128xbf16>
    %12 = vector.shape_cast %11 : vector<1x8x128xbf16> to vector<8x128xbf16>
    %c2 = arith.constant 2 : index
    %c0_14 = arith.constant 0 : index
    %c0_15 = arith.constant 0 : index
    %13 = vector.load %arg3[%c2, %c0_14, %c0_15] : memref<3x128x256xbf16, #tpu.memory_space<vmem>>, vector<1x128x256xbf16>
    %14 = vector.shape_cast %13 : vector<1x128x256xbf16> to vector<128x256xbf16>
    %cst_16 = arith.constant dense<0.000000e+00> : vector<8x256xf32>
    %15 = tpu.matmul %12, %14, %cst_16 {dimension_numbers = #tpu.dot_dimension_numbers<[1], [0], [0], [1], [0, 0, 1, 1], [], []>} : vector<8x128xbf16>, vector<128x256xbf16>, vector<8x256xf32> -> vector<8x256xf32>
    %16 = arith.addf %10, %15 : vector<8x256xf32>
    %c0_17 = arith.constant 0 : index
    %c1_18 = arith.constant 1 : index
    %c0_19 = arith.constant 0 : index
    %17 = vector.load %arg1[%c0_17, %c1_18, %c0_19] : memref<1x16x128xbf16, #tpu.memory_space<vmem>>, vector<1x8x8xbf16>
    %18 = vector.shape_cast %17 : vector<1x8x8xbf16> to vector<8x8xbf16>
    %c0_20 = arith.constant 0 : index
    %c0_21 = arith.constant 0 : index
    %c0_22 = arith.constant 0 : index
    %19 = vector.load %arg4[%c0_20, %c0_21, %c0_22] : memref<3x8x256xbf16, #tpu.memory_space<vmem>>, vector<1x8x256xbf16>
    %20 = vector.shape_cast %19 : vector<1x8x256xbf16> to vector<8x256xbf16>
    %cst_23 = arith.constant dense<0.000000e+00> : vector<8x256xf32>
    %21 = tpu.matmul %18, %20, %cst_23 {dimension_numbers = #tpu.dot_dimension_numbers<[1], [0], [0], [1], [0, 0, 1, 1], [], []>} : vector<8x8xbf16>, vector<8x256xbf16>, vector<8x256xf32> -> vector<8x256xf32>
    %22 = arith.addf %16, %21 : vector<8x256xf32>
    %c0_24 = arith.constant 0 : index
    %c1_25 = arith.constant 1 : index
    %c0_26 = arith.constant 0 : index
    %23 = vector.load %arg2[%c0_24, %c1_25, %c0_26] : memref<1x16x128xbf16, #tpu.memory_space<vmem>>, vector<1x8x8xbf16>
    %24 = vector.shape_cast %23 : vector<1x8x8xbf16> to vector<8x8xbf16>
    %c1_27 = arith.constant 1 : index
    %c0_28 = arith.constant 0 : index
    %c0_29 = arith.constant 0 : index
    %25 = vector.load %arg4[%c1_27, %c0_28, %c0_29] : memref<3x8x256xbf16, #tpu.memory_space<vmem>>, vector<1x8x256xbf16>
    %26 = vector.shape_cast %25 : vector<1x8x256xbf16> to vector<8x256xbf16>
    %cst_30 = arith.constant dense<0.000000e+00> : vector<8x256xf32>
    %27 = tpu.matmul %24, %26, %cst_30 {dimension_numbers = #tpu.dot_dimension_numbers<[1], [0], [0], [1], [0, 0, 1, 1], [], []>} : vector<8x8xbf16>, vector<8x256xbf16>, vector<8x256xf32> -> vector<8x256xf32>
    %28 = arith.addf %22, %27 : vector<8x256xf32>
    %c0_31 = arith.constant 0 : index
    %c2_32 = arith.constant 2 : index
    %c0_33 = arith.constant 0 : index
    %29 = vector.load %arg1[%c0_31, %c2_32, %c0_33] : memref<1x16x128xbf16, #tpu.memory_space<vmem>>, vector<1x8x8xbf16>
    %30 = vector.shape_cast %29 : vector<1x8x8xbf16> to vector<8x8xbf16>
    %c2_34 = arith.constant 2 : index
    %c0_35 = arith.constant 0 : index
    %c0_36 = arith.constant 0 : index
    %31 = vector.load %arg4[%c2_34, %c0_35, %c0_36] : memref<3x8x256xbf16, #tpu.memory_space<vmem>>, vector<1x8x256xbf16>
    %32 = vector.shape_cast %31 : vector<1x8x256xbf16> to vector<8x256xbf16>
    %cst_37 = arith.constant dense<0.000000e+00> : vector<8x256xf32>
    %33 = tpu.matmul %30, %32, %cst_37 {dimension_numbers = #tpu.dot_dimension_numbers<[1], [0], [0], [1], [0, 0, 1, 1], [], []>} : vector<8x8xbf16>, vector<8x256xbf16>, vector<8x256xf32> -> vector<8x256xf32>
    %34 = arith.addf %28, %33 : vector<8x256xf32>
    %c0_38 = arith.constant 0 : index
    %c0_39 = arith.constant 0 : index
    %35 = vector.load %arg5[%c0_38, %c0_39] : memref<1x256xf32, #tpu.memory_space<vmem>>, vector<1x256xf32>
    %36 = vector.broadcast %35 : vector<1x256xf32> to vector<8x256xf32>
    %37 = arith.addf %34, %36 : vector<8x256xf32>
    %cst_40 = arith.constant 4.471500e-02 : f32
    %38 = vector.broadcast %cst_40 : f32 to vector<8x256xf32>
    %39 = arith.mulf %38, %37 : vector<8x256xf32>
    %40 = arith.mulf %39, %37 : vector<8x256xf32>
    %41 = arith.mulf %40, %37 : vector<8x256xf32>
    %42 = arith.addf %37, %41 : vector<8x256xf32>
    %cst_41 = arith.constant 0.797884583 : f32
    %43 = vector.broadcast %cst_41 : f32 to vector<8x256xf32>
    %44 = arith.mulf %43, %42 : vector<8x256xf32>
    %cst_42 = arith.constant 5.000000e-01 : f32
    %45 = vector.broadcast %cst_42 : f32 to vector<8x256xf32>
    %46 = arith.mulf %45, %37 : vector<8x256xf32>
    %47 = math.tanh %44 : vector<8x256xf32>
    %cst_43 = arith.constant 1.000000e+00 : f32
    %48 = vector.broadcast %cst_43 : f32 to vector<8x256xf32>
    %49 = arith.addf %48, %47 : vector<8x256xf32>
    %50 = arith.mulf %46, %49 : vector<8x256xf32>
    %51 = arith.truncf %50 : vector<8x256xf32> to vector<8x256xbf16>
    %c0_44 = arith.constant 0 : index
    %c0_45 = arith.constant 0 : index
    %c0_46 = arith.constant 0 : index
    %52 = vector.load %arg6[%c0_44, %c0_45, %c0_46] : memref<1x8x256xbf16, #tpu.memory_space<vmem>>, vector<1x8x256xbf16>
    %53 = vector.shape_cast %52 : vector<1x8x256xbf16> to vector<8x256xbf16>
    %54 = vector.shape_cast %51 : vector<8x256xbf16> to vector<1x8x256xbf16>
    tpu.vector_store %arg6[%c0_44, %c0_45, %c0_46], %54 {strides = array<i32>} : memref<1x8x256xbf16, #tpu.memory_space<vmem>>, vector<1x8x256xbf16>,
    return
  }
  func.func @transform_0(%arg0: i32) -> (i32, i32, i32) {
    %c0_i32 = arith.constant 0 : i32
    %c0_i32_0 = arith.constant 0 : i32
    %c0_i32_1 = arith.constant 0 : i32
    return %arg0, %c0_i32, %c0_i32_0 : i32, i32, i32
  }
  func.func @transform_1(%arg0: i32) -> (i32, i32, i32) {
    %c0_i32 = arith.constant 0 : i32
    %c0_i32_0 = arith.constant 0 : i32
    %c0_i32_1 = arith.constant 0 : i32
    return %arg0, %c0_i32, %c0_i32_0 : i32, i32, i32
  }
  func.func @transform_2(%arg0: i32) -> (i32, i32, i32) {
    %c0_i32 = arith.constant 0 : i32
    %c0_i32_0 = arith.constant 0 : i32
    %c0_i32_1 = arith.constant 0 : i32
    %c0_i32_2 = arith.constant 0 : i32
    return %c0_i32, %c0_i32_0, %c0_i32_1 : i32, i32, i32
  }
  func.func @transform_3(%arg0: i32) -> (i32, i32, i32) {
    %c0_i32 = arith.constant 0 : i32
    %c0_i32_0 = arith.constant 0 : i32
    %c0_i32_1 = arith.constant 0 : i32
    %c0_i32_2 = arith.constant 0 : i32
    return %c0_i32, %c0_i32_0, %c0_i32_1 : i32, i32, i32
  }
  func.func @transform_4(%arg0: i32) -> (i32, i32) {
    %c0_i32 = arith.constant 0 : i32
    %c0_i32_0 = arith.constant 0 : i32
    %c0_i32_1 = arith.constant 0 : i32
    return %c0_i32, %c0_i32_0 : i32, i32
  }
  func.func @transform_5(%arg0: i32) -> (i32, i32, i32) {
    %c0_i32 = arith.constant 0 : i32
    %c0_i32_0 = arith.constant 0 : i32
    %c0_i32_1 = arith.constant 0 : i32
    return %arg0, %c0_i32, %c0_i32_0 : i32, i32, i32
  }
}

</mosaic_0001>

<llo_original>
// kernel: tpu_custom_call.1
$region0: #{tpu_custom_call.1}
  #allocation0 [shape = 'u32[]', space=smem, size = 0x4, offset = 0x4, fixed_abs, tag = 'smem constant byte address 0x4 - core index']
  #allocation1 [shape = 'u32[144,128]{1,0:T(1,128)}', space=vmem, size = 0x12000, scoped, tag = 'internal scratch']
  %s0 = inlined_call_operand.hbm [shape: bf16[2,16,128], index: 0, kind: input, shape index: {}]
  %s1 = inlined_call_operand.hbm [shape: bf16[2,16,128], index: 1, kind: input, shape index: {}]
  %s2 = inlined_call_operand.hbm [shape: bf16[3,128,256], index: 2, kind: input, shape index: {}]
  %s3 = inlined_call_operand.hbm [shape: bf16[3,8,256], index: 3, kind: input, shape index: {}]
  %s4 = inlined_call_operand.vmem [shape: f32[1,256], index: 4, kind: input, shape index: {}]
  %s5 = inlined_call_operand.hbm [shape: bf16[2,8,256], index: 5, kind: output, shape index: {}]
  %s6 = sld [smem:[#allocation0]]
  $region69: #{tpu_custom_call.1} parent=0
    _
  %s8 = ssub.s32 1, %s6
  %s9 = scalar_select 0, %s8, %s6
  $region1: #{tpu_custom_call.1} parent=0
    #allocation2 [shape = 'u8[8192]{0}', space=vmem, size = 0x2000, scoped, tag = 'input window, operand 0']
    #allocation3 [shape = 's32[2]{0}', space=sflag, size = 0x8, scoped, tag = 'scoped memory for tpu_custom_call.1']
    #allocation4 [shape = 's32[2]{0}', space=sflag, size = 0x8, scoped, tag = 'scoped memory for tpu_custom_call.1']
    #allocation5 [shape = 'u8[8192]{0}', space=vmem, size = 0x2000, scoped, tag = 'input window, operand 1']
    #allocation6 [shape = 's32[2]{0}', space=sflag, size = 0x8, scoped, tag = 'scoped memory for tpu_custom_call.1']
    #allocation7 [shape = 'u8[196608]{0}', space=vmem, size = 0x30000, scoped, tag = 'input window, operand 2, single buffered']
    #allocation8 [shape = 'u8[12288]{0}', space=vmem, size = 0x3000, scoped, tag = 'input window, operand 3, single buffered']
    #allocation9 [shape = 's32[1]{0}', space=sflag, size = 0x4, scoped, tag = 'scoped memory for tpu_custom_call.1']
    #allocation10 [shape = 'u8[8192]{0}', space=vmem, size = 0x2000, scoped, tag = 'output window, operand 0']
    %10 = vsyncpa [#allocation3], 0
    %s11 = scalar_lea.sflag [#allocation3], 1
    %12 = vsyncpa %s11, 0
    %13 = vsyncpa [#allocation6], 0
    %s14 = scalar_lea.sflag [#allocation6], 1
    %15 = vsyncpa %s14, 0
    %16 = vsyncpa [#allocation9], 0
    %17 = vsyncpa [#allocation4], 0
    %s18 = scalar_lea.sflag [#allocation4], 1
    %19 = vsyncpa %s18, 0
    loop: start=0, step=1, limit=4
    $region2: #{tpu_custom_call.1} parent=1 // loop_pre_header
      _
    $region3: #{tpu_custom_call.1} parent=1 // loop_header
      %s21 = sphi 0, %s25
      %p22 = scmp.ge.s32.totalorder %s21, 4
      %s31 = sphi 0, %s33
      %s34 = sphi 0, %s31
      %s35 = sphi 0, %s34
      %s51 = sphi 0, %s35
      %s57 = sphi 0, %s59
      %s60 = sphi 0, %s57
      %s61 = sphi 0, %s60
      %s77 = sphi 0, %s61
      %s81 = sphi 0, %s81
      %s83 = sphi 0, %s81
      %s84 = sphi 0, %s83
      %s98 = sphi 0, %s84
      %s102 = sphi 0, %s102
      %s104 = sphi 0, %s102
      %s105 = sphi 0, %s104
      %s119 = sphi 0, %s105
      %s123 = sphi 0, %s123
      %s125 = sphi 0, %s123
      %s126 = sphi 0, %s125
      %s140 = sphi 0, %s126
      %s146 = sphi 0, %s148
      %s149 = sphi 0, %s146
      %s150 = sphi 0, %s149
      %s166 = sphi 0, %s150
    $region4: #{tpu_custom_call.1} parent=1 // loop_header_branch
      %24 = sbr.rel (%p22) target = $region8
    $region5: #{tpu_custom_call.1} parent=1 // loop_body
      %s26 = ssub.s32 %s21, 1
      %s27 = ssub.s32 %s21, 2
      %s28 = sadd.s32 %s21, 1
      %s29 = ssub.s32 %s21, %s28
      %p30 = scmp.eq.s32.totalorder %s29, 0
      %s32 = sadd.s32 %s31, 1
      %s33 = scalar_select %p30, %s31, %s32
      %p36 = pneg %p30
      %p37 = scmp.eq.s32.totalorder %s21, 1
      %p38 = por %p36, %p37
      %p39 = scmp.ne.s32.totalorder %s31, %s34
      %p40 = scmp.eq.s32.totalorder %s21, 0
      %p41 = por %p39, %p40
      %p42 = scmp.ne.s32.totalorder %s31, %s34
      %p43 = scmp.eq.s32.totalorder %s26, 1
      %p44 = por %p42, %p43
      %p45 = scmp.ne.s32.totalorder %s34, %s35
      %p46 = scmp.eq.s32.totalorder %s26, 0
      %p47 = por %p45, %p46
      %p48 = scmp.ne.s32.totalorder %s34, %s35
      %p49 = scmp.eq.s32.totalorder %s27, 1
      %p50 = por %p48, %p49
      %p52 = scmp.ne.s32.totalorder %s35, %s51
      %p53 = scmp.eq.s32.totalorder %s27, 0
      %p54 = por %p52, %p53
      %s55 = ssub.s32 %s21, %s28
      %p56 = scmp.eq.s32.totalorder %s55, 0
      %s58 = sadd.s32 %s57, 1
      %s59 = scalar_select %p56, %s57, %s58
      %p62 = pneg %p56
      %p63 = scmp.eq.s32.totalorder %s21, 1
      %p64 = por %p62, %p63
      %p65 = scmp.ne.s32.totalorder %s57, %s60
      %p66 = scmp.eq.s32.totalorder %s21, 0
      %p67 = por %p65, %p66
      %p68 = scmp.ne.s32.totalorder %s57, %s60
      %p69 = scmp.eq.s32.totalorder %s26, 1
      %p70 = por %p68, %p69
      %p71 = scmp.ne.s32.totalorder %s60, %s61
      %p72 = scmp.eq.s32.totalorder %s26, 0
      %p73 = por %p71, %p72
      %p74 = scmp.ne.s32.totalorder %s60, %s61
      %p75 = scmp.eq.s32.totalorder %s27, 1
      %p76 = por %p74, %p75
      %p78 = scmp.ne.s32.totalorder %s61, %s77
      %p79 = scmp.eq.s32.totalorder %s27, 0
      %p80 = por %p78, %p79
      %s82 = sadd.s32 %s81, 1
      %p85 = scmp.eq.s32.totalorder %s21, 1
      %p86 = scmp.ne.s32.totalorder %s81, %s83
      %p87 = scmp.eq.s32.totalorder %s21, 0
      %p88 = por %p86, %p87
      %p89 = scmp.ne.s32.totalorder %s81, %s83
      %p90 = scmp.eq.s32.totalorder %s26, 1
      %p91 = por %p89, %p90
      %p92 = scmp.ne.s32.totalorder %s83, %s84
      %p93 = scmp.eq.s32.totalorder %s26, 0
      %p94 = por %p92, %p93
      %p95 = scmp.ne.s32.totalorder %s83, %s84
      %p96 = scmp.eq.s32.totalorder %s27, 1
      %p97 = por %p95, %p96
      %p99 = scmp.ne.s32.totalorder %s84, %s98
      %p100 = scmp.eq.s32.totalorder %s27, 0
      %p101 = por %p99, %p100
      %s103 = sadd.s32 %s102, 1
      %p106 = scmp.eq.s32.totalorder %s21, 1
      %p107 = scmp.ne.s32.totalorder %s102, %s104
      %p108 = scmp.eq.s32.totalorder %s21, 0
      %p109 = por %p107, %p108
      %p110 = scmp.ne.s32.totalorder %s102, %s104
      %p111 = scmp.eq.s32.totalorder %s26, 1
      %p112 = por %p110, %p111
      %p113 = scmp.ne.s32.totalorder %s104, %s105
      %p114 = scmp.eq.s32.totalorder %s26, 0
      %p115 = por %p113, %p114
      %p116 = scmp.ne.s32.totalorder %s104, %s105
      %p117 = scmp.eq.s32.totalorder %s27, 1
      %p118 = por %p116, %p117
      %p120 = scmp.ne.s32.totalorder %s105, %s119
      %p121 = scmp.eq.s32.totalorder %s27, 0
      %p122 = por %p120, %p121
      %s124 = sadd.s32 %s123, 1
      %p127 = scmp.eq.s32.totalorder %s21, 1
      %p128 = scmp.ne.s32.totalorder %s123, %s125
      %p129 = scmp.eq.s32.totalorder %s21, 0
      %p130 = por %p128, %p129
      %p131 = scmp.ne.s32.totalorder %s123, %s125
      %p132 = scmp.eq.s32.totalorder %s26, 1
      %p133 = por %p131, %p132
      %p134 = scmp.ne.s32.totalorder %s125, %s126
      %p135 = scmp.eq.s32.totalorder %s26, 0
      %p136 = por %p134, %p135
      %p137 = scmp.ne.s32.totalorder %s125, %s126
      %p138 = scmp.eq.s32.totalorder %s27, 1
      %p139 = por %p137, %p138
      %p141 = scmp.ne.s32.totalorder %s126, %s140
      %p142 = scmp.eq.s32.totalorder %s27, 0
      %p143 = por %p141, %p142
      %s144 = ssub.s32 %s21, %s28
      %p145 = scmp.eq.s32.totalorder %s144, 0
      %s147 = sadd.s32 %s146, 1
      %s148 = scalar_select %p145, %s146, %s147
      %p151 = pneg %p145
      %p152 = scmp.eq.s32.totalorder %s21, 1
      %p153 = por %p151, %p152
      %p154 = scmp.ne.s32.totalorder %s146, %s149
      %p155 = scmp.eq.s32.totalorder %s21, 0
      %p156 = por %p154, %p155
      %p157 = scmp.ne.s32.totalorder %s146, %s149
      %p158 = scmp.eq.s32.totalorder %s26, 1
      %p159 = por %p157, %p158
      %p160 = scmp.ne.s32.totalorder %s149, %s150
      %p161 = scmp.eq.s32.totalorder %s26, 0
      %p162 = por %p160, %p161
      %p163 = scmp.ne.s32.totalorder %s149, %s150
      %p164 = scmp.eq.s32.totalorder %s27, 1
      %p165 = por %p163, %p164
      %p167 = scmp.ne.s32.totalorder %s150, %s166
      %p168 = scmp.eq.s32.totalorder %s27, 0
      %p169 = por %p167, %p168
      %p170 = scmp.le.s32.totalorder 1, %s21
      %p171 = scmp.lt.s32.totalorder %s21, 3
      %p172 = pnand %p170, %p171
      %p173 = pneg %p172
      // Predicated region
      $region9: #{tpu_custom_call.1} parent=5 // pred_check
        _
      $region10: #{tpu_custom_call.1} parent=5 // pred_check_branch
        %175 = sbr.rel (%p172) target = $region12
      $region11: #{tpu_custom_call.1} parent=5 // pred_region
        %s176 = ssub.s32 %s21, 1
        // Predicated region
        $region13: #{tpu_custom_call.1} parent=11 // pred_check
          %p177 = pneg %p94
        $region14: #{tpu_custom_call.1} parent=11 // pred_check_branch
          %179 = sbr.rel (%p177) target = $region16
        $region15: #{tpu_custom_call.1} parent=11 // pred_region
          %s181 = ssub.s32 6144, 6144
          %182 = vsyncadd [#allocation6], %s181
          %s183 = sshll.u32 [#allocation7], 4
          %s184 = int_to_ptr.vmem [resolvable:$true] %s183
          %189 = dma.hbm_to_vmem [thread:$0]  %s2, 6144, %s184, [#allocation6], 128, 128, 8
        $region16: #{tpu_custom_call.1} parent=11 // pred_fallthru
          _
        // Predicated region
        $region17: #{tpu_custom_call.1} parent=11 // pred_check
          %p190 = pneg %p115
        $region18: #{tpu_custom_call.1} parent=11 // pred_check_branch
          %192 = sbr.rel (%p190) target = $region20
        $region19: #{tpu_custom_call.1} parent=11 // pred_region
          %s194 = ssub.s32 384, 384
          %195 = vsyncadd [#allocation9], %s194
          %s196 = sshll.u32 [#allocation8], 4
          %s197 = int_to_ptr.vmem [resolvable:$true] %s196
          %202 = dma.hbm_to_vmem [thread:$0]  %s3, 384, %s197, [#allocation9], 128, 128, 8
        $region20: #{tpu_custom_call.1} parent=11 // pred_fallthru
          _
        // Predicated region
        $region21: #{tpu_custom_call.1} parent=11 // pred_check
          %p203 = pneg %p136
        $region22: #{tpu_custom_call.1} parent=11 // pred_check_branch
          %205 = sbr.rel (%p203) target = $region24
        $region23: #{tpu_custom_call.1} parent=11 // pred_region
          _
        $region24: #{tpu_custom_call.1} parent=11 // pred_fallthru
          _
      $region12: #{tpu_custom_call.1} parent=5 // pred_fallthru
        _
      %p206 = scmp.lt.s32.totalorder %s21, 2
      // Predicated region
      $region25: #{tpu_custom_call.1} parent=5 // pred_check
        %p207 = pneg %p206
      $region26: #{tpu_custom_call.1} parent=5 // pred_check_branch
        %209 = sbr.rel (%p207) target = $region28
      $region27: #{tpu_custom_call.1} parent=5 // pred_region
        // Predicated region
        $region29: #{tpu_custom_call.1} parent=27 // pred_check
          %p210 = pneg %p41
        $region30: #{tpu_custom_call.1} parent=27 // pred_check_branch
          %212 = sbr.rel (%p210) target = $region32
        $region31: #{tpu_custom_call.1} parent=27 // pred_region
          %s213 = sand.u32 %s31, 1
          %s214 = scalar_lea.sflag [#allocation3], %s213
          %s215 = sand.u32 %s31, 1
          %s216 = smul.addr %s215, 8
          %s217 = scalar_lea.vmem [#allocation2], %s216
          %s219 = ssub.s32 128, 128
          %220 = vsyncadd %s214, %s219
          %s221 = smul.addr %s21, 2
          %s222 = smul.addr %s221, 64
          %s223 = scalar_lea.hbm %s0, %s222
          %s224 = sshll.u32 %s217, 4
          %s225 = int_to_ptr.vmem [resolvable:$true] %s224
          %230 = dma.hbm_to_vmem [thread:$0]  %s223, 128, %s225, %s214, 64, 64, 4
        $region32: #{tpu_custom_call.1} parent=27 // pred_fallthru
          _
        // Predicated region
        $region33: #{tpu_custom_call.1} parent=27 // pred_check
          %p231 = pneg %p67
        $region34: #{tpu_custom_call.1} parent=27 // pred_check_branch
          %233 = sbr.rel (%p231) target = $region36
        $region35: #{tpu_custom_call.1} parent=27 // pred_region
          %s234 = sand.u32 %s21, 1
          %s235 = scalar_lea.sflag [#allocation6], %s234
          %s236 = sand.u32 %s57, 1
          %s237 = smul.addr %s236, 8
          %s238 = scalar_lea.vmem [#allocation5], %s237
          %s240 = ssub.s32 128, 128
          %241 = vsyncadd %s235, %s240
          %s242 = smul.addr %s21, 2
          %s243 = smul.addr %s242, 64
          %s244 = scalar_lea.hbm %s1, %s243
          %s245 = sshll.u32 %s238, 4
          %s246 = int_to_ptr.vmem [resolvable:$true] %s245
          %251 = dma.hbm_to_vmem [thread:$0]  %s244, 128, %s246, %s235, 64, 64, 4
        $region36: #{tpu_custom_call.1} parent=27 // pred_fallthru
          _
      $region28: #{tpu_custom_call.1} parent=5 // pred_fallthru
        _
      %p252 = scmp.le.s32.totalorder 1, %s21
      %p253 = scmp.lt.s32.totalorder %s21, 3
      %p254 = pnand %p252, %p253
      %p255 = pneg %p254
      // Predicated region
      $region37: #{tpu_custom_call.1} parent=5 // pred_check
        _
      $region38: #{tpu_custom_call.1} parent=5 // pred_check_branch
        %257 = sbr.rel (%p254) target = $region40
      $region39: #{tpu_custom_call.1} parent=5 // pred_region
        %s258 = ssub.s32 %s21, 1
        %s259 = sand.u32 %s34, 1
        %s260 = scalar_lea.sflag [#allocation3], %s259
        %s261 = sand.u32 %s34, 1
        %s262 = smul.addr %s261, 8
        %s263 = scalar_lea.vmem [#allocation2], %s262
        // Predicated region
        $region41: #{tpu_custom_call.1} parent=39 // pred_check
          %p264 = pneg %p47
        $region42: #{tpu_custom_call.1} parent=39 // pred_check_branch
          %266 = sbr.rel (%p264) target = $region44
        $region43: #{tpu_custom_call.1} parent=39 // pred_region
          %267 = dma.done %s260, 128
        $region44: #{tpu_custom_call.1} parent=39 // pred_fallthru
          _
        %s268 = sand.u32 %s26, 1
        %s269 = scalar_lea.sflag [#allocation6], %s268
        %s270 = sand.u32 %s60, 1
        %s271 = smul.addr %s270, 8
        %s272 = scalar_lea.vmem [#allocation5], %s271
        // Predicated region
        $region45: #{tpu_custom_call.1} parent=39 // pred_check
          %p273 = pneg %p73
        $region46: #{tpu_custom_call.1} parent=39 // pred_check_branch
          %275 = sbr.rel (%p273) target = $region48
        $region47: #{tpu_custom_call.1} parent=39 // pred_region
          %276 = dma.done %s269, 128
        $region48: #{tpu_custom_call.1} parent=39 // pred_fallthru
          _
        // Predicated region
        $region49: #{tpu_custom_call.1} parent=39 // pred_check
          %p277 = pneg %p94
        $region50: #{tpu_custom_call.1} parent=39 // pred_check_branch
          %279 = sbr.rel (%p277) target = $region52
        $region51: #{tpu_custom_call.1} parent=39 // pred_region
          %280 = dma.done [#allocation6], 6144
        $region52: #{tpu_custom_call.1} parent=39 // pred_fallthru
          _
        // Predicated region
        $region53: #{tpu_custom_call.1} parent=39 // pred_check
          %p281 = pneg %p115
        $region54: #{tpu_custom_call.1} parent=39 // pred_check_branch
          %283 = sbr.rel (%p281) target = $region56
        $region55: #{tpu_custom_call.1} parent=39 // pred_region
          %284 = dma.done [#allocation9], 384
        $region56: #{tpu_custom_call.1} parent=39 // pred_fallthru
          _
        %s285 = sand.u32 %s34, 1
        %s286 = scalar_lea.sflag [#allocation3], %s285
        %s287 = sand.u32 %s34, 1
        %s288 = smul.addr %s287, 8
        %s289 = scalar_lea.vmem [#allocation2], %s288
        %p290 = pneg %p47
        %p291 = pneg %p44
        %s292 = sand.u32 %s26, 1
        %s293 = scalar_lea.sflag [#allocation6], %s292
        %s294 = sand.u32 %s60, 1
        %s295 = smul.addr %s294, 8
        %s296 = scalar_lea.vmem [#allocation5], %s295
        %p297 = pneg %p73
        %p298 = pneg %p70
        %p299 = pneg %p94
        %p300 = pneg %p91
        %p301 = pneg %p115
        %p302 = pneg %p112
        %p303 = pneg %p136
        %p304 = pneg %p133
        %p305 = pneg %p162
        %p306 = pneg %p159
        %s307 = sand.u32 %s149, 1
        %s308 = scalar_lea.sflag [#allocation4], %s307
        %s309 = sand.u32 %s149, 1
        %s310 = smul.addr %s309, 8
        %s311 = scalar_lea.vmem [#allocation10], %s310
        %v313 = vld [vmem:[%s263] sm:$0xf]
        %v314 = vld [vmem:[#allocation7] sm:$0xff]
        %v315 = vld [vmem:[#allocation7 + $0x8] sm:$0xff]
        %v316 = vld [vmem:[#allocation7 + $0x10] sm:$0xff]
        %v317 = vld [vmem:[#allocation7 + $0x18] sm:$0xff]
        %v318 = vld [vmem:[#allocation7 + $0x20] sm:$0xff]
        %v319 = vld [vmem:[#allocation7 + $0x28] sm:$0xff]
        %v320 = vld [vmem:[#allocation7 + $0x30] sm:$0xff]
        %v321 = vld [vmem:[#allocation7 + $0x38] sm:$0xff]
        %v322 = vld [vmem:[#allocation7 + $0x40] sm:$0xff]
        %v323 = vld [vmem:[#allocation7 + $0x48] sm:$0xff]
        %v324 = vld [vmem:[#allocation7 + $0x50] sm:$0xff]
        %v325 = vld [vmem:[#allocation7 + $0x58] sm:$0xff]
        %v326 = vld [vmem:[#allocation7 + $0x60] sm:$0xff]
        %v327 = vld [vmem:[#allocation7 + $0x68] sm:$0xff]
        %v328 = vld [vmem:[#allocation7 + $0x70] sm:$0xff]
        %v329 = vld [vmem:[#allocation7 + $0x78] sm:$0xff]
        %v330 = vld [vmem:[%s272] sm:$0xf]
        %s331 = scalar_lea.vmem [#allocation7], 128
        %v332 = vld [vmem:[%s331] sm:$0xff]
        %v333 = vld [vmem:[%s331 + $0x8] sm:$0xff]
        %v334 = vld [vmem:[%s331 + $0x10] sm:$0xff]
        %v335 = vld [vmem:[%s331 + $0x18] sm:$0xff]
        %v336 = vld [vmem:[%s331 + $0x20] sm:$0xff]
        %v337 = vld [vmem:[%s331 + $0x28] sm:$0xff]
        %v338 = vld [vmem:[%s331 + $0x30] sm:$0xff]
        %v339 = vld [vmem:[%s331 + $0x38] sm:$0xff]
        %v340 = vld [vmem:[%s331 + $0x40] sm:$0xff]
        %v341 = vld [vmem:[%s331 + $0x48] sm:$0xff]
        %v342 = vld [vmem:[%s331 + $0x50] sm:$0xff]
        %v343 = vld [vmem:[%s331 + $0x58] sm:$0xff]
        %v344 = vld [vmem:[%s331 + $0x60] sm:$0xff]
        %v345 = vld [vmem:[%s331 + $0x68] sm:$0xff]
        %v346 = vld [vmem:[%s331 + $0x70] sm:$0xff]
        %v347 = vld [vmem:[%s331 + $0x78] sm:$0xff]
        %v364 = vunpack.c.l.b16 %v332
        %v365 = vunpack.c.h.b16 %v332
        %v366 = vunpack.c.l.b16 %v333
        %v367 = vunpack.c.h.b16 %v333
        %v368 = vunpack.c.l.b16 %v334
        %v369 = vunpack.c.h.b16 %v334
        %v370 = vunpack.c.l.b16 %v335
        %v371 = vunpack.c.h.b16 %v335
        %v372 = vunpack.c.l.b16 %v336
        %v373 = vunpack.c.h.b16 %v336
        %v374 = vunpack.c.l.b16 %v337
        %v375 = vunpack.c.h.b16 %v337
        %v376 = vunpack.c.l.b16 %v338
        %v377 = vunpack.c.h.b16 %v338
        %v378 = vunpack.c.l.b16 %v339
        %v379 = vunpack.c.h.b16 %v339
        %v380 = vunpack.c.l.b16 %v340
        %v381 = vunpack.c.h.b16 %v340
        %v382 = vunpack.c.l.b16 %v341
        %v383 = vunpack.c.h.b16 %v341
        %v384 = vunpack.c.l.b16 %v342
        %v385 = vunpack.c.h.b16 %v342
        %v386 = vunpack.c.l.b16 %v343
        %v387 = vunpack.c.h.b16 %v343
        %v388 = vunpack.c.l.b16 %v344
        %v389 = vunpack.c.h.b16 %v344
        %v390 = vunpack.c.l.b16 %v345
        %v391 = vunpack.c.h.b16 %v345
        %v392 = vunpack.c.l.b16 %v346
        %v393 = vunpack.c.h.b16 %v346
        %v394 = vunpack.c.l.b16 %v347
        %v395 = vunpack.c.h.b16 %v347
        %v396 = vpack.c.b16 %v366, %v364
        %v397 = vpack.c.b16 %v367, %v365
        %v398 = vpack.c.b16 %v370, %v368
        %v399 = vpack.c.b16 %v371, %v369
        %v400 = vpack.c.b16 %v374, %v372
        %v401 = vpack.c.b16 %v375, %v373
        %v402 = vpack.c.b16 %v378, %v376
        %v403 = vpack.c.b16 %v379, %v377
        %v404 = vpack.c.b16 %v382, %v380
        %v405 = vpack.c.b16 %v383, %v381
        %v406 = vpack.c.b16 %v386, %v384
        %v407 = vpack.c.b16 %v387, %v385
        %v408 = vpack.c.b16 %v390, %v388
        %v409 = vpack.c.b16 %v391, %v389
        %v410 = vpack.c.b16 %v394, %v392
        %v411 = vpack.c.b16 %v395, %v393
        %428 = vmatprep.subr.bf16.mxu0 %v397
        %429 = vmatpush1.bf16.msra.mxu0 %v396
        %430 = vmatprep.subr.bf16.mxu0 %v399
        %431 = vmatpush1.bf16.msra.mxu0 %v398
        %432 = vmatprep.subr.bf16.mxu0 %v401
        %433 = vmatpush1.bf16.msra.mxu0 %v400
        %434 = vmatprep.subr.bf16.mxu0 %v403
        %435 = vmatpush1.bf16.msra.mxu0 %v402
        %436 = vmatprep.subr.bf16.mxu0 %v405
        %437 = vmatpush1.bf16.msra.mxu0 %v404
        %438 = vmatprep.subr.bf16.mxu0 %v407
        %439 = vmatpush1.bf16.msra.mxu0 %v406
        %440 = vmatprep.subr.bf16.mxu0 %v409
        %441 = vmatpush1.bf16.msra.mxu0 %v408
        %442 = vmatprep.subr.bf16.mxu0 %v411
        %443 = vmatpush1.bf16.msra.mxu0 %v410
        %444 = vmatprep.subr.bf16.mxu0 0
        %445 = vmatpush1.bf16.msra.mxu0 0
        %446 = vmatprep.subr.bf16.mxu0 0
        %447 = vmatpush1.bf16.msra.mxu0 0
        %448 = vmatprep.subr.bf16.mxu0 0
        %449 = vmatpush1.bf16.msra.mxu0 0
        %450 = vmatprep.subr.bf16.mxu0 0
        %451 = vmatpush1.bf16.msra.mxu0 0
        %452 = vmatprep.subr.bf16.mxu0 0
        %453 = vmatpush1.bf16.msra.mxu0 0
        %454 = vmatprep.subr.bf16.mxu0 0
        %455 = vmatpush1.bf16.msra.mxu0 0
        %456 = vmatprep.subr.bf16.mxu0 0
        %457 = vmatpush1.bf16.msra.mxu0 0
        %458 = vmatprep.subr.bf16.mxu0 0
        %459 = vmatpush1.bf16.msra.mxu0 0
        %460 = vmatprep.mubr.bf16.mxu0 0
        %461 = vmatmul.mubr.bf16.gmra.mrb[0].mxu0 %v330
        %v462 = vpop.f32.mrb[0].mxu0
        %v463 = vadd.f32 0.0, %v462
        %v464 = vpop.f32.mrb[0].mxu0
        %v465 = vadd.f32 0.0, %v464
        %v466 = vpop.f32.mrb[0].mxu0
        %v467 = vpop.f32.mrb[0].mxu0
        %468 = vdwg.mxu0
        %v485 = vunpack.c.l.b16 %v314
        %v486 = vunpack.c.h.b16 %v314
        %v487 = vunpack.c.l.b16 %v315
        %v488 = vunpack.c.h.b16 %v315
        %v489 = vunpack.c.l.b16 %v316
        %v490 = vunpack.c.h.b16 %v316
        %v491 = vunpack.c.l.b16 %v317
        %v492 = vunpack.c.h.b16 %v317
        %v493 = vunpack.c.l.b16 %v318
        %v494 = vunpack.c.h.b16 %v318
        %v495 = vunpack.c.l.b16 %v319
        %v496 = vunpack.c.h.b16 %v319
        %v497 = vunpack.c.l.b16 %v320
        %v498 = vunpack.c.h.b16 %v320
        %v499 = vunpack.c.l.b16 %v321
        %v500 = vunpack.c.h.b16 %v321
        %v501 = vunpack.c.l.b16 %v322
        %v502 = vunpack.c.h.b16 %v322
        %v503 = vunpack.c.l.b16 %v323
        %v504 = vunpack.c.h.b16 %v323
        %v505 = vunpack.c.l.b16 %v324
        %v506 = vunpack.c.h.b16 %v324
        %v507 = vunpack.c.l.b16 %v325
        %v508 = vunpack.c.h.b16 %v325
        %v509 = vunpack.c.l.b16 %v326
        %v510 = vunpack.c.h.b16 %v326
        %v511 = vunpack.c.l.b16 %v327
        %v512 = vunpack.c.h.b16 %v327
        %v513 = vunpack.c.l.b16 %v328
        %v514 = vunpack.c.h.b16 %v328
        %v515 = vunpack.c.l.b16 %v329
        %v516 = vunpack.c.h.b16 %v329
        %v517 = vpack.c.b16 %v487, %v485
        %v518 = vpack.c.b16 %v488, %v486
        %v519 = vpack.c.b16 %v491, %v489
        %v520 = vpack.c.b16 %v492, %v490
        %v521 = vpack.c.b16 %v495, %v493
        %v522 = vpack.c.b16 %v496, %v494
        %v523 = vpack.c.b16 %v499, %v497
        %v524 = vpack.c.b16 %v500, %v498
        %v525 = vpack.c.b16 %v503, %v501
        %v526 = vpack.c.b16 %v504, %v502
        %v527 = vpack.c.b16 %v507, %v505
        %v528 = vpack.c.b16 %v508, %v506
        %v529 = vpack.c.b16 %v511, %v509
        %v530 = vpack.c.b16 %v512, %v510
        %v531 = vpack.c.b16 %v515, %v513
        %v532 = vpack.c.b16 %v516, %v514
        %549 = vmatprep.subr.bf16.mxu0 %v518
        %550 = vmatpush1.bf16.msra.mxu0 %v517
        %551 = vmatprep.subr.bf16.mxu0 %v520
        %552 = vmatpush1.bf16.msra.mxu0 %v519
        %553 = vmatprep.subr.bf16.mxu0 %v522
        %554 = vmatpush1.bf16.msra.mxu0 %v521
        %555 = vmatprep.subr.bf16.mxu0 %v524
        %556 = vmatpush1.bf16.msra.mxu0 %v523
        %557 = vmatprep.subr.bf16.mxu0 %v526
        %558 = vmatpush1.bf16.msra.mxu0 %v525
        %559 = vmatprep.subr.bf16.mxu0 %v528
        %560 = vmatpush1.bf16.msra.mxu0 %v527
        %561 = vmatprep.subr.bf16.mxu0 %v530
        %562 = vmatpush1.bf16.msra.mxu0 %v529
        %563 = vmatprep.subr.bf16.mxu0 %v532
        %564 = vmatpush1.bf16.msra.mxu0 %v531
        %565 = vmatprep.subr.bf16.mxu0 0
        %566 = vmatpush1.bf16.msra.mxu0 0
        %567 = vmatprep.subr.bf16.mxu0 0
        %568 = vmatpush1.bf16.msra.mxu0 0
        %569 = vmatprep.subr.bf16.mxu0 0
        %570 = vmatpush1.bf16.msra.mxu0 0
        %571 = vmatprep.subr.bf16.mxu0 0
        %572 = vmatpush1.bf16.msra.mxu0 0
        %573 = vmatprep.subr.bf16.mxu0 0
        %574 = vmatpush1.bf16.msra.mxu0 0
        %575 = vmatprep.subr.bf16.mxu0 0
        %576 = vmatpush1.bf16.msra.mxu0 0
        %577 = vmatprep.subr.bf16.mxu0 0
        %578 = vmatpush1.bf16.msra.mxu0 0
        %579 = vmatprep.subr.bf16.mxu0 0
        %580 = vmatpush1.bf16.msra.mxu0 0
        %581 = vmatprep.mubr.bf16.mxu0 0
        %582 = vmatmul.mubr.bf16.gmra.mrb[0].mxu0 %v313
        %v583 = vpop.f32.mrb[0].mxu0
        %v584 = vadd.f32 %v463, %v583
        %v585 = vpop.f32.mrb[0].mxu0
        %v586 = vadd.f32 %v465, %v585
        %v587 = vpop.f32.mrb[0].mxu0
        %v588 = vpop.f32.mrb[0].mxu0
        %589 = vdwg.mxu0
        %v590 = vld [vmem:[%s263] sm:$0xf]
        %v591 = vld [vmem:[%s263 + $0x4] sm:$0x1]
        %s592 = scalar_lea.vmem [#allocation7], 256
        %v593 = vld [vmem:[%s592] sm:$0xff]
        %v594 = vld [vmem:[%s592 + $0x8] sm:$0xff]
        %v595 = vld [vmem:[%s592 + $0x10] sm:$0xff]
        %v596 = vld [vmem:[%s592 + $0x18] sm:$0xff]
        %v597 = vld [vmem:[%s592 + $0x20] sm:$0xff]
        %v598 = vld [vmem:[%s592 + $0x28] sm:$0xff]
        %v599 = vld [vmem:[%s592 + $0x30] sm:$0xff]
        %v600 = vld [vmem:[%s592 + $0x38] sm:$0xff]
        %v601 = vld [vmem:[%s592 + $0x40] sm:$0xff]
        %v602 = vld [vmem:[%s592 + $0x48] sm:$0xff]
        %v603 = vld [vmem:[%s592 + $0x50] sm:$0xff]
        %v604 = vld [vmem:[%s592 + $0x58] sm:$0xff]
        %v605 = vld [vmem:[%s592 + $0x60] sm:$0xff]
        %v606 = vld [vmem:[%s592 + $0x68] sm:$0xff]
        %v607 = vld [vmem:[%s592 + $0x70] sm:$0xff]
        %v608 = vld [vmem:[%s592 + $0x78] sm:$0xff]
        %v611 = vunpack.c.l.b16 %v590
        %v612 = vunpack.c.l.b16 %v591
        %v613 = vpack.c.b16 %v612, %v611
        %v615 = vshrl.u32 %v613, 16
        %v617 = vshll.u32 %v613, 16
        %v619 = vrot.slane %v617, 1
        %v620 = vor.u32 %v615, %v619
        %v638 = vunpack.c.l.b16 %v593
        %v639 = vunpack.c.h.b16 %v593
        %v640 = vunpack.c.l.b16 %v594
        %v641 = vunpack.c.h.b16 %v594
        %v642 = vunpack.c.l.b16 %v595
        %v643 = vunpack.c.h.b16 %v595
        %v644 = vunpack.c.l.b16 %v596
        %v645 = vunpack.c.h.b16 %v596
        %v646 = vunpack.c.l.b16 %v597
        %v647 = vunpack.c.h.b16 %v597
        %v648 = vunpack.c.l.b16 %v598
        %v649 = vunpack.c.h.b16 %v598
        %v650 = vunpack.c.l.b16 %v599
        %v651 = vunpack.c.h.b16 %v599
        %v652 = vunpack.c.l.b16 %v600
        %v653 = vunpack.c.h.b16 %v600
        %v654 = vunpack.c.l.b16 %v601
        %v655 = vunpack.c.h.b16 %v601
        %v656 = vunpack.c.l.b16 %v602
        %v657 = vunpack.c.h.b16 %v602
        %v658 = vunpack.c.l.b16 %v603
        %v659 = vunpack.c.h.b16 %v603
        %v660 = vunpack.c.l.b16 %v604
        %v661 = vunpack.c.h.b16 %v604
        %v662 = vunpack.c.l.b16 %v605
        %v663 = vunpack.c.h.b16 %v605
        %v664 = vunpack.c.l.b16 %v606
        %v665 = vunpack.c.h.b16 %v606
        %v666 = vunpack.c.l.b16 %v607
        %v667 = vunpack.c.h.b16 %v607
        %v668 = vunpack.c.l.b16 %v608
        %v669 = vunpack.c.h.b16 %v608
        %v670 = vpack.c.b16 %v640, %v638
        %v671 = vpack.c.b16 %v641, %v639
        %v672 = vpack.c.b16 %v644, %v642
        %v673 = vpack.c.b16 %v645, %v643
        %v674 = vpack.c.b16 %v648, %v646
        %v675 = vpack.c.b16 %v649, %v647
        %v676 = vpack.c.b16 %v652, %v650
        %v677 = vpack.c.b16 %v653, %v651
        %v678 = vpack.c.b16 %v656, %v654
        %v679 = vpack.c.b16 %v657, %v655
        %v680 = vpack.c.b16 %v660, %v658
        %v681 = vpack.c.b16 %v661, %v659
        %v682 = vpack.c.b16 %v664, %v662
        %v683 = vpack.c.b16 %v665, %v663
        %v684 = vpack.c.b16 %v668, %v666
        %v685 = vpack.c.b16 %v669, %v667
        %702 = vmatprep.subr.bf16.mxu0 %v671
        %703 = vmatpush1.bf16.msra.mxu0 %v670
        %704 = vmatprep.subr.bf16.mxu0 %v673
        %705 = vmatpush1.bf16.msra.mxu0 %v672
        %706 = vmatprep.subr.bf16.mxu0 %v675
        %707 = vmatpush1.bf16.msra.mxu0 %v674
        %708 = vmatprep.subr.bf16.mxu0 %v677
        %709 = vmatpush1.bf16.msra.mxu0 %v676
        %710 = vmatprep.subr.bf16.mxu0 %v679
        %711 = vmatpush1.bf16.msra.mxu0 %v678
        %712 = vmatprep.subr.bf16.mxu0 %v681
        %713 = vmatpush1.bf16.msra.mxu0 %v680
        %714 = vmatprep.subr.bf16.mxu0 %v683
        %715 = vmatpush1.bf16.msra.mxu0 %v682
        %716 = vmatprep.subr.bf16.mxu0 %v685
        %717 = vmatpush1.bf16.msra.mxu0 %v684
        %718 = vmatprep.subr.bf16.mxu0 0
        %719 = vmatpush1.bf16.msra.mxu0 0
        %720 = vmatprep.subr.bf16.mxu0 0
        %721 = vmatpush1.bf16.msra.mxu0 0
        %722 = vmatprep.subr.bf16.mxu0 0
        %723 = vmatpush1.bf16.msra.mxu0 0
        %724 = vmatprep.subr.bf16.mxu0 0
        %725 = vmatpush1.bf16.msra.mxu0 0
        %726 = vmatprep.subr.bf16.mxu0 0
        %727 = vmatpush1.bf16.msra.mxu0 0
        %728 = vmatprep.subr.bf16.mxu0 0
        %729 = vmatpush1.bf16.msra.mxu0 0
        %730 = vmatprep.subr.bf16.mxu0 0
        %731 = vmatpush1.bf16.msra.mxu0 0
        %732 = vmatprep.subr.bf16.mxu0 0
        %733 = vmatpush1.bf16.msra.mxu0 0
        %734 = vmatprep.mubr.bf16.mxu0 0
        %735 = vmatmul.mubr.bf16.gmra.mrb[0].mxu0 %v620
        %v736 = vpop.f32.mrb[0].mxu0
        %v737 = vadd.f32 0.0, %v736
        %v738 = vpop.f32.mrb[0].mxu0
        %v739 = vadd.f32 0.0, %v738
        %v740 = vpop.f32.mrb[0].mxu0
        %v741 = vpop.f32.mrb[0].mxu0
        %742 = vdwg.mxu0
        %v743 = vadd.f32 %v584, %v737
        %v744 = vadd.f32 %v586, %v739
        %v745 = vld [vmem:[#allocation8] sm:$0xff]
        %v747 = vunpack.c.l.b16 %v745
        %v748 = vunpack.c.h.b16 %v745
        %v749 = vpack.c.b16 %v747, %v747
        %v750 = vpack.c.b16 %v748, %v748
        %vm751 = vcmask 64512
        %v753 = vsel %vm751, %v620, 0
        %vm755 = vcmask 1043456
        %v757 = vsel %vm755, %v749, 0
        %v760 = vsel %vm755, %v750, 0
        %762 = vmatprep.subr.bf16.mxu0 %v760
        %763 = vmatpush1.bf16.msra.mxu0 %v757
        %764 = vmatprep.subr.bf16.mxu0 0
        %765 = vmatpush1.bf16.msra.mxu0 0
        %766 = vmatprep.subr.bf16.mxu0 0
        %767 = vmatpush1.bf16.msra.mxu0 0
        %768 = vmatprep.subr.bf16.mxu0 0
        %769 = vmatpush1.bf16.msra.mxu0 0
        %770 = vmatprep.subr.bf16.mxu0 0
        %771 = vmatpush1.bf16.msra.mxu0 0
        %772 = vmatprep.subr.bf16.mxu0 0
        %773 = vmatpush1.bf16.msra.mxu0 0
        %774 = vmatprep.subr.bf16.mxu0 0
        %775 = vmatpush1.bf16.msra.mxu0 0
        %776 = vmatprep.subr.bf16.mxu0 0
        %777 = vmatpush1.bf16.msra.mxu0 0
        %778 = vmatprep.subr.bf16.mxu0 0
        %779 = vmatpush1.bf16.msra.mxu0 0
        %780 = vmatprep.subr.bf16.mxu0 0
        %781 = vmatpush1.bf16.msra.mxu0 0
        %782 = vmatprep.subr.bf16.mxu0 0
        %783 = vmatpush1.bf16.msra.mxu0 0
        %784 = vmatprep.subr.bf16.mxu0 0
        %785 = vmatpush1.bf16.msra.mxu0 0
        %786 = vmatprep.subr.bf16.mxu0 0
        %787 = vmatpush1.bf16.msra.mxu0 0
        %788 = vmatprep.subr.bf16.mxu0 0
        %789 = vmatpush1.bf16.msra.mxu0 0
        %790 = vmatprep.subr.bf16.mxu0 0
        %791 = vmatpush1.bf16.msra.mxu0 0
        %792 = vmatprep.subr.bf16.mxu0 0
        %793 = vmatpush1.bf16.msra.mxu0 0
        %794 = vmatprep.mubr.bf16.mxu0 0
        %795 = vmatmul.mubr.bf16.gmra.mrb[0].mxu0 %v753
        %v796 = vpop.f32.mrb[0].mxu0
        %v797 = vadd.f32 0.0, %v796
        %v798 = vpop.f32.mrb[0].mxu0
        %v799 = vadd.f32 0.0, %v798
        %v800 = vpop.f32.mrb[0].mxu0
        %v801 = vpop.f32.mrb[0].mxu0
        %802 = vdwg.mxu0
        %v803 = vadd.f32 %v743, %v797
        %v804 = vadd.f32 %v744, %v799
        %v805 = vld [vmem:[%s272] sm:$0xf]
        %v806 = vld [vmem:[%s272 + $0x4] sm:$0x1]
        %s807 = scalar_lea.vmem [#allocation8], 8
        %v808 = vld [vmem:[%s807] sm:$0xff]
        %v811 = vunpack.c.l.b16 %v805
        %v812 = vunpack.c.l.b16 %v806
        %v813 = vpack.c.b16 %v812, %v811
        %v815 = vshrl.u32 %v813, 16
        %v817 = vshll.u32 %v813, 16
        %v819 = vrot.slane %v817, 1
        %v820 = vor.u32 %v815, %v819
        %v822 = vunpack.c.l.b16 %v808
        %v823 = vunpack.c.h.b16 %v808
        %v824 = vpack.c.b16 %v822, %v822
        %v825 = vpack.c.b16 %v823, %v823
        %v827 = vsel %vm751, %v820, 0
        %v830 = vsel %vm755, %v824, 0
        %v833 = vsel %vm755, %v825, 0
        %835 = vmatprep.subr.bf16.mxu0 %v833
        %836 = vmatpush1.bf16.msra.mxu0 %v830
        %837 = vmatprep.subr.bf16.mxu0 0
        %838 = vmatpush1.bf16.msra.mxu0 0
        %839 = vmatprep.subr.bf16.mxu0 0
        %840 = vmatpush1.bf16.msra.mxu0 0
        %841 = vmatprep.subr.bf16.mxu0 0
        %842 = vmatpush1.bf16.msra.mxu0 0
        %843 = vmatprep.subr.bf16.mxu0 0
        %844 = vmatpush1.bf16.msra.mxu0 0
        %845 = vmatprep.subr.bf16.mxu0 0
        %846 = vmatpush1.bf16.msra.mxu0 0
        %847 = vmatprep.subr.bf16.mxu0 0
        %848 = vmatpush1.bf16.msra.mxu0 0
        %849 = vmatprep.subr.bf16.mxu0 0
        %850 = vmatpush1.bf16.msra.mxu0 0
        %851 = vmatprep.subr.bf16.mxu0 0
        %852 = vmatpush1.bf16.msra.mxu0 0
        %853 = vmatprep.subr.bf16.mxu0 0
        %854 = vmatpush1.bf16.msra.mxu0 0
        %855 = vmatprep.subr.bf16.mxu0 0
        %856 = vmatpush1.bf16.msra.mxu0 0
        %857 = vmatprep.subr.bf16.mxu0 0
        %858 = vmatpush1.bf16.msra.mxu0 0
        %859 = vmatprep.subr.bf16.mxu0 0
        %860 = vmatpush1.bf16.msra.mxu0 0
        %861 = vmatprep.subr.bf16.mxu0 0
        %862 = vmatpush1.bf16.msra.mxu0 0
        %863 = vmatprep.subr.bf16.mxu0 0
        %864 = vmatpush1.bf16.msra.mxu0 0
        %865 = vmatprep.subr.bf16.mxu0 0
        %866 = vmatpush1.bf16.msra.mxu0 0
        %867 = vmatprep.mubr.bf16.mxu0 0
        %868 = vmatmul.mubr.bf16.gmra.mrb[0].mxu0 %v827
        %v869 = vpop.f32.mrb[0].mxu0
        %v870 = vadd.f32 0.0, %v869
        %v871 = vpop.f32.mrb[0].mxu0
        %v872 = vadd.f32 0.0, %v871
        %v873 = vpop.f32.mrb[0].mxu0
        %v874 = vpop.f32.mrb[0].mxu0
        %875 = vdwg.mxu0
        %v876 = vadd.f32 %v803, %v870
        %v877 = vadd.f32 %v804, %v872
        %v878 = vld [vmem:[%s263] sm:$0xe]
        %s879 = scalar_lea.vmem [#allocation8], 16
        %v880 = vld [vmem:[%s879] sm:$0xff]
        %v882 = vunpack.c.l.b16 %v878
        %v883 = vpack.c.b16 %v612, %v882
        %v884 = vrot.slane %v883, 1
        %v886 = vunpack.c.l.b16 %v880
        %v887 = vunpack.c.h.b16 %v880
        %v888 = vpack.c.b16 %v886, %v886
        %v889 = vpack.c.b16 %v887, %v887
        %v891 = vsel %vm751, %v884, 0
        %v894 = vsel %vm755, %v888, 0
        %v897 = vsel %vm755, %v889, 0
        %899 = vmatprep.subr.bf16.mxu0 %v897
        %900 = vmatpush1.bf16.msra.mxu0 %v894
        %901 = vmatprep.subr.bf16.mxu0 0
        %902 = vmatpush1.bf16.msra.mxu0 0
        %903 = vmatprep.subr.bf16.mxu0 0
        %904 = vmatpush1.bf16.msra.mxu0 0
        %905 = vmatprep.subr.bf16.mxu0 0
        %906 = vmatpush1.bf16.msra.mxu0 0
        %907 = vmatprep.subr.bf16.mxu0 0
        %908 = vmatpush1.bf16.msra.mxu0 0
        %909 = vmatprep.subr.bf16.mxu0 0
        %910 = vmatpush1.bf16.msra.mxu0 0
        %911 = vmatprep.subr.bf16.mxu0 0
        %912 = vmatpush1.bf16.msra.mxu0 0
        %913 = vmatprep.subr.bf16.mxu0 0
        %914 = vmatpush1.bf16.msra.mxu0 0
        %915 = vmatprep.subr.bf16.mxu0 0
        %916 = vmatpush1.bf16.msra.mxu0 0
        %917 = vmatprep.subr.bf16.mxu0 0
        %918 = vmatpush1.bf16.msra.mxu0 0
        %919 = vmatprep.subr.bf16.mxu0 0
        %920 = vmatpush1.bf16.msra.mxu0 0
        %921 = vmatprep.subr.bf16.mxu0 0
        %922 = vmatpush1.bf16.msra.mxu0 0
        %923 = vmatprep.subr.bf16.mxu0 0
        %924 = vmatpush1.bf16.msra.mxu0 0
        %925 = vmatprep.subr.bf16.mxu0 0
        %926 = vmatpush1.bf16.msra.mxu0 0
        %927 = vmatprep.subr.bf16.mxu0 0
        %928 = vmatpush1.bf16.msra.mxu0 0
        %929 = vmatprep.subr.bf16.mxu0 0
        %930 = vmatpush1.bf16.msra.mxu0 0
        %931 = vmatprep.mubr.bf16.mxu0 0
        %932 = vmatmul.mubr.bf16.gmra.mrb[0].mxu0 %v891
        %v933 = vpop.f32.mrb[0].mxu0
        %v934 = vadd.f32 0.0, %v933
        %v935 = vpop.f32.mrb[0].mxu0
        %v936 = vadd.f32 0.0, %v935
        %v937 = vpop.f32.mrb[0].mxu0
        %v938 = vpop.f32.mrb[0].mxu0
        %939 = vdwg.mxu0
        %v940 = vadd.f32 %v876, %v934
        %v941 = vadd.f32 %v877, %v936
        %v942 = vld [vmem:[%s4] sm:$0x3]
        %v944 = vlaneseq
        %v945 = vshrl.u32 %v944, 7
        %v946 = vsub.s32 0, %v945
        %v947 = vrot.slane %v942, %v946
        %v948 = vlaneseq
        %v949 = vshrl.u32 %v948, 7
        %v950 = vsub.s32 1, %v949
        %v951 = vrot.slane %v942, %v950
        %v954 = vadd.f32 %v940, %v947
        %v955 = vadd.f32 %v941, %v951
        %v956 = vmul.f32 %v954, 0.044715
        %v957 = vmul.f32 %v955, 0.044715
        %v958 = vmul.f32 %v956, %v954
        %v959 = vmul.f32 %v957, %v955
        %v960 = vmul.f32 %v958, %v954
        %v961 = vmul.f32 %v959, %v955
        %v962 = vadd.f32 %v954, %v960
        %v963 = vadd.f32 %v955, %v961
        %v964 = vmul.f32 %v962, 0.7978846
        %v965 = vmul.f32 %v963, 0.7978846
        %v966 = vmul.f32 %v954, 0.5
        %v967 = vmul.f32 %v955, 0.5
        %v968 = vtanh.pop %v964
        %v969 = vtanh.pop %v965
        %v970 = vadd.f32 %v968, 1.0
        %v971 = vadd.f32 %v969, 1.0
        %v972 = vmul.f32 %v966, %v970
        %v973 = vmul.f32 %v967, %v971
        %v974 = vpack.c.bf16 %v972, %v972
        %v975 = vpack.c.bf16 %v973, %v973
        %v978 = vunpack.c.l.b16 %v974
        %v979 = vunpack.c.l.b16 %v975
        %v980 = vpack.c.b16 %v979, %v978
        %982 = vst [vmem:[%s311] sm:$0xff] %v980
        %s983 = sand.u32 %s149, 1
        %s984 = scalar_lea.sflag [#allocation4], %s983
        %s985 = sand.u32 %s149, 1
        %s986 = smul.addr %s985, 8
        %s987 = scalar_lea.vmem [#allocation10], %s986
        // Predicated region
        $region57: #{tpu_custom_call.1} parent=39 // pred_check
          %p988 = pneg %p159
        $region58: #{tpu_custom_call.1} parent=39 // pred_check_branch
          %990 = sbr.rel (%p988) target = $region60
        $region59: #{tpu_custom_call.1} parent=39 // pred_region
          %s992 = ssub.s32 128, 128
          %993 = vsyncadd %s984, %s992
          %s994 = smul.addr %s26, 2
          %s995 = smul.addr %s994, 64
          %s996 = scalar_lea.hbm %s5, %s995
          %s998 = sshll.u32 %s987, 4
          %s999 = int_to_ptr.vmem [resolvable:$true] %s998
          %1001 = dma.vmem_to_hbm [thread:$0]  %s999, 128, %s996, %s984
        $region60: #{tpu_custom_call.1} parent=39 // pred_fallthru
          _
      $region40: #{tpu_custom_call.1} parent=5 // pred_fallthru
        _
      %p1002 = scmp.le.s32.totalorder 2, %s21
      // Predicated region
      $region61: #{tpu_custom_call.1} parent=5 // pred_check
        %p1003 = pneg %p1002
      $region62: #{tpu_custom_call.1} parent=5 // pred_check_branch
        %1005 = sbr.rel (%p1003) target = $region64
      $region63: #{tpu_custom_call.1} parent=5 // pred_region
        %s1006 = ssub.s32 %s21, 2
        // Predicated region
        $region65: #{tpu_custom_call.1} parent=63 // pred_check
          %p1007 = pneg %p165
        $region66: #{tpu_custom_call.1} parent=63 // pred_check_branch
          %1009 = sbr.rel (%p1007) target = $region68
        $region67: #{tpu_custom_call.1} parent=63 // pred_region
          %s1010 = sand.u32 %s150, 1
          %s1011 = scalar_lea.sflag [#allocation4], %s1010
          %s1012 = sand.u32 %s150, 1
          %s1013 = smul.addr %s1012, 8
          %s1014 = scalar_lea.vmem [#allocation10], %s1013
          %1015 = dma.done %s1011, 128
        $region68: #{tpu_custom_call.1} parent=63 // pred_fallthru
          _
      $region64: #{tpu_custom_call.1} parent=5 // pred_fallthru
        _
    $region6: #{tpu_custom_call.1} parent=1 // loop_footer
      %s25 = sadd.s32 1, %s21
    $region7: #{tpu_custom_call.1} parent=1 // loop_footer_branch
      %20 = sbr.rel target = $region3
    $region8: #{tpu_custom_call.1} parent=1 // loop_exit
      _
    %1016 = vsyncpa [#allocation3], 1
    %s1017 = scalar_lea.sflag [#allocation3], 1
    %1018 = vsyncpa %s1017, 1
    %1019 = vsyncpa [#allocation6], 1
    %s1020 = scalar_lea.sflag [#allocation6], 1
    %1021 = vsyncpa %s1020, 1
    %1022 = vsyncpa [#allocation9], 1
    %1023 = vsyncpa [#allocation4], 1
    %s1024 = scalar_lea.sflag [#allocation4], 1
    %1025 = vsyncpa %s1024, 1

</llo_original>
